<compile_context>
chip_gen: v7x
topology: tpu7x:2x2x1
jax: 0.10.0
libtpu: 0.0.40
codegen_flags: <defaults>
</compile_context>

<pallas_src>
import functools

import jax
import jax.numpy as jnp
from jax.experimental import pallas as pl
from jax.experimental.pallas import tpu as pltpu


# ---------------------------------------------------------------------------
# Fused kernel: embedding lookup -> num_layers LSTM cells -> fc
# ---------------------------------------------------------------------------
def _fused_decoder_kernel(tok_ref, emb_ref, wih_ref, whh_ref, b_ref,
                          h_in_ref, c_in_ref, wfc_ref, bfc_ref,
                          preds_ref, h_out_ref, c_out_ref):
    L, N, H = h_in_ref.shape
    D = wih_ref.shape[1]            # padded input width (>= embedding width)

    # ---- embedding lookup: token ids live in SMEM, table is VMEM-resident ----
    # batch is tiny & static -> unrolled dynamic row slices, then concat.
    rows = [emb_ref[pl.ds(tok_ref[b], 1), :] for b in range(N)]   # each (1, D)
    layer_in = jnp.concatenate(rows, axis=0)                      # (N, D)
    # dropout on the embedding: identity (eval)

    # ---- num_layers LSTM cells, statically unrolled ----
    h_new = None
    for l in range(L):
        gates = (
            jnp.dot(layer_in, wih_ref[l], preferred_element_type=jnp.float32)
            + jnp.dot(h_in_ref[l], whh_ref[l], preferred_element_type=jnp.float32)
            + b_ref[l]
        )                                                         # (N, 4H) [i,f,g,o]
        i_g = jax.nn.sigmoid(gates[:, 0 * H:1 * H])
        f_g = jax.nn.sigmoid(gates[:, 1 * H:2 * H])
        g_g = jnp.tanh(gates[:, 2 * H:3 * H])
        o_g = jax.nn.sigmoid(gates[:, 3 * H:4 * H])
        c_new = f_g * c_in_ref[l] + i_g * g_g
        h_new = o_g * jnp.tanh(c_new)
        c_out_ref[l] = c_new
        h_out_ref[l] = h_new
        # inter-layer dropout: identity (eval); re-pad h to width D if needed
        layer_in = h_new if D == H else jnp.pad(h_new, ((0, 0), (0, D - H)))

    # ---- final fc (lane-dense padded output, sliced outside the kernel) ----
    preds_ref[...] = (
        jnp.dot(h_new, wfc_ref[...], preferred_element_type=jnp.float32)
        + bfc_ref[...]
    )


# ---------------------------------------------------------------------------
# Wrapper: single pallas_call, no grid (everything is one VMEM-resident block)
# ---------------------------------------------------------------------------
def _fused_step(prep, x_tokens, hidden_state, cell_state):
    L, N, H = hidden_state.shape
    o_pad = prep["w_fc"].shape[1]

    vmem = pl.BlockSpec(memory_space=pltpu.MemorySpace.VMEM)
    smem = pl.BlockSpec(memory_space=pltpu.MemorySpace.SMEM)

    out_shape = (
        jax.ShapeDtypeStruct((N, o_pad), jnp.float32),   # padded predictions
        jax.ShapeDtypeStruct((L, N, H), jnp.float32),    # new hidden
        jax.ShapeDtypeStruct((L, N, H), jnp.float32),    # new cell
    )
    return pl.pallas_call(
        _fused_decoder_kernel,
        out_shape=out_shape,
        in_specs=[smem] + [vmem] * 8,
        out_specs=(vmem, vmem, vmem),
        # in-place state update: hidden_state -> h_out, cell_state -> c_out
        input_output_aliases={5: 1, 6: 2},
    )(x_tokens, prep["emb"], prep["w_ih"], prep["w_hh"], prep["b"],
      hidden_state, cell_state, prep["w_fc"], prep["b_fc"])


@functools.partial(jax.jit, static_argnums=(4,), donate_argnums=(2, 3))
def decoder_lstm_forward(prep, x_tokens, hidden_state, cell_state, output_size):
    """
    x_tokens     : (batch,) int32
    hidden_state : (num_layers, batch, hidden)   (donated -> updated in place)
    cell_state   : (num_layers, batch, hidden)   (donated -> updated in place)
    returns (predictions (batch, output_size), hidden_state, cell_state)
    """
    preds_pad, h_out, c_out = _fused_step(prep, x_tokens, hidden_state, cell_state)
    return preds_pad[:, :output_size], h_out, c_out


# ---------------------------------------------------------------------------
# One-time parameter preparation (pad + stack so the fused kernel can consume)
# ---------------------------------------------------------------------------
def prepare_params(params):
    emb = params["embedding"]                    # (V, E)
    H = params["w_hh"][0].shape[0]
    E = emb.shape[1]
    D = max(E, H)                                # common padded input width
    lanes = 128

    emb_pad = jnp.pad(emb, ((0, 0), (0, D - E)))                       # (V, D)
    w_ih = jnp.stack([jnp.pad(w, ((0, D - w.shape[0]), (0, 0)))
                      for w in params["w_ih"]])                        # (L, D, 4H)
    w_hh = jnp.stack(params["w_hh"])                                   # (L, H, 4H)
    b = jnp.stack(params["b"])                                         # (L, 1, 4H)

    out_size = params["w_fc"].shape[1]
    o_pad = lanes * pl.cdiv(out_size, lanes)                           # lane-dense
    w_fc = jnp.pad(params["w_fc"], ((0, 0), (0, o_pad - out_size)))    # (H, O_pad)
    b_fc = jnp.pad(params["b_fc"], ((0, 0), (0, o_pad - out_size)))    # (1, O_pad)

    return {"emb": emb_pad, "w_ih": w_ih, "w_hh": w_hh, "b": b,
            "w_fc": w_fc, "b_fc": b_fc}


# ---------------------------------------------------------------------------
# Deterministic parameter init (shapes from DecoderLSTM.__init__)
# ---------------------------------------------------------------------------
def init_params(key, vocab, embed, hidden, num_layers, output_size):
    ks = jax.random.split(key, 4 + 3 * num_layers)
    scale = 0.1
    params = {
        "embedding": scale * jax.random.normal(ks[0], (vocab, embed), jnp.float32),
        "w_fc": scale * jax.random.normal(ks[1], (hidden, output_size), jnp.float32),
        "b_fc": scale * jax.random.normal(ks[2], (1, output_size), jnp.float32),
        "w_ih": [],
        "w_hh": [],
        "b": [],
    }
    for l in range(num_layers):
        in_dim = embed if l == 0 else hidden
        k1, k2, k3 = ks[3 + 3 * l:6 + 3 * l]
        params["w_ih"].append(scale * jax.random.normal(k1, (in_dim, 4 * hidden), jnp.float32))
        params["w_hh"].append(scale * jax.random.normal(k2, (hidden, 4 * hidden), jnp.float32))
        # b = b_ih + b_hh, kept 2D for TPU layout friendliness
        params["b"].append(scale * jax.random.normal(k3, (1, 4 * hidden), jnp.float32))
    return params


# ---------------------------------------------------------------------------
# Pure-JAX reference (for a correctness check against the fused kernel)
# ---------------------------------------------------------------------------
def reference_forward(params, x_tokens, h0, c0):
    H = params["w_hh"][0].shape[0]
    inp = params["embedding"][x_tokens]
    hs, cs = [], []
    for l in range(len(params["w_ih"])):
        gates = inp @ params["w_ih"][l] + h0[l] @ params["w_hh"][l] + params["b"][l]
        i_g = jax.nn.sigmoid(gates[:, 0 * H:1 * H])
        f_g = jax.nn.sigmoid(gates[:, 1 * H:2 * H])
        g_g = jnp.tanh(gates[:, 2 * H:3 * H])
        o_g = jax.nn.sigmoid(gates[:, 3 * H:4 * H])
        c = f_g * c0[l] + i_g * g_g
        h = o_g * jnp.tanh(c)
        hs.append(h); cs.append(c)
        inp = h
    preds = inp @ params["w_fc"] + params["b_fc"]
    return preds, jnp.stack(hs), jnp.stack(cs)


# ---------------------------------------------------------------------------
if __name__ == "__main__":
    vocab = 50          # input_size / output_size
    embed = 16          # embedding_size
    hidden = 32         # hidden_size
    num_layers = 2
    output_size = vocab
    batch = 4

    key = jax.random.PRNGKey(0)
    k_par, k_x, k_h, k_c = jax.random.split(key, 4)

    params = init_params(k_par, vocab, embed, hidden, num_layers, output_size)
    prep = prepare_params(params)

    x_tokens = jax.random.randint(k_x, (batch,), 0, vocab, dtype=jnp.int32)
    hidden_state = 0.1 * jax.random.normal(k_h, (num_layers, batch, hidden), jnp.float32)
    cell_state = 0.1 * jax.random.normal(k_c, (num_layers, batch, hidden), jnp.float32)

    # Reference computed before the call (hidden/cell buffers are donated).
    ref_preds, ref_h, ref_c = reference_forward(params, x_tokens, hidden_state, cell_state)

    preds, h_out, c_out = decoder_lstm_forward(
        prep, x_tokens, hidden_state, cell_state, output_size)
    jax.block_until_ready((preds, h_out, c_out))

    assert preds.shape == (batch, output_size)
    assert h_out.shape == (num_layers, batch, hidden)
    assert c_out.shape == (num_layers, batch, hidden)
    assert jnp.allclose(preds, ref_preds, atol=1e-3, rtol=1e-3)
    assert jnp.allclose(h_out, ref_h, atol=1e-3, rtol=1e-3)
    assert jnp.allclose(c_out, ref_c, atol=1e-3, rtol=1e-3)
    print("KERNEL_OK")
</pallas_src>

<mosaic_0001>
module attributes {stable_mosaic.version = 11 : i64} {
  func.func @_fused_decoder_kernel(%arg0: memref<4xi32, #tpu.memory_space<smem>>, %arg1: memref<50x32xf32, #tpu.memory_space<vmem>>, %arg2: memref<2x32x128xf32, #tpu.memory_space<vmem>>, %arg3: memref<2x32x128xf32, #tpu.memory_space<vmem>>, %arg4: memref<2x1x128xf32, #tpu.memory_space<vmem>>, %arg5: memref<2x4x32xf32, #tpu.memory_space<vmem>>, %arg6: memref<2x4x32xf32, #tpu.memory_space<vmem>>, %arg7: memref<32x128xf32, #tpu.memory_space<vmem>>, %arg8: memref<1x128xf32, #tpu.memory_space<vmem>>, %arg9: memref<4x128xf32, #tpu.memory_space<vmem>>, %arg10: memref<2x4x32xf32, #tpu.memory_space<vmem>>, %arg11: memref<2x4x32xf32, #tpu.memory_space<vmem>>) attributes {dimension_semantics = [], scalar_prefetch = 0 : i64, scratch_operands = 0 : i64, tpu.core_type = #tpu.core_type<tc>} {
    %c0 = arith.constant 0 : index
    %0 = memref.load %arg0[%c0] : memref<4xi32, #tpu.memory_space<smem>>
    %1 = arith.index_cast %0 : i32 to index
    %c0_0 = arith.constant 0 : index
    %2 = vector.load %arg1[%1, %c0_0] : memref<50x32xf32, #tpu.memory_space<vmem>>, vector<1x32xf32>
    %c1 = arith.constant 1 : index
    %3 = memref.load %arg0[%c1] : memref<4xi32, #tpu.memory_space<smem>>
    %4 = arith.index_cast %3 : i32 to index
    %c0_1 = arith.constant 0 : index
    %5 = vector.load %arg1[%4, %c0_1] : memref<50x32xf32, #tpu.memory_space<vmem>>, vector<1x32xf32>
    %c2 = arith.constant 2 : index
    %6 = memref.load %arg0[%c2] : memref<4xi32, #tpu.memory_space<smem>>
    %7 = arith.index_cast %6 : i32 to index
    %c0_2 = arith.constant 0 : index
    %8 = vector.load %arg1[%7, %c0_2] : memref<50x32xf32, #tpu.memory_space<vmem>>, vector<1x32xf32>
    %c3 = arith.constant 3 : index
    %9 = memref.load %arg0[%c3] : memref<4xi32, #tpu.memory_space<smem>>
    %10 = arith.index_cast %9 : i32 to index
    %c0_3 = arith.constant 0 : index
    %11 = vector.load %arg1[%10, %c0_3] : memref<50x32xf32, #tpu.memory_space<vmem>>, vector<1x32xf32>
    %12 = tpu.concatenate %2, %5, %8, %11 in 0 : vector<1x32xf32>, vector<1x32xf32>, vector<1x32xf32>, vector<1x32xf32> -> vector<4x32xf32>
    %c0_4 = arith.constant 0 : index
    %c0_5 = arith.constant 0 : index
    %c0_6 = arith.constant 0 : index
    %13 = vector.load %arg2[%c0_4, %c0_5, %c0_6] : memref<2x32x128xf32, #tpu.memory_space<vmem>>, vector<1x32x128xf32>
    %14 = vector.shape_cast %13 : vector<1x32x128xf32> to vector<32x128xf32>
    %cst = arith.constant dense<0.000000e+00> : vector<4x128xf32>
    %15 = tpu.matmul %12, %14, %cst {dimension_numbers = #tpu.dot_dimension_numbers<[1], [0], [0], [1], [0, 0, 1, 1], [], []>} : vector<4x32xf32>, vector<32x128xf32>, vector<4x128xf32> -> vector<4x128xf32>
    %c0_7 = arith.constant 0 : index
    %c0_8 = arith.constant 0 : index
    %c0_9 = arith.constant 0 : index
    %16 = vector.load %arg5[%c0_7, %c0_8, %c0_9] : memref<2x4x32xf32, #tpu.memory_space<vmem>>, vector<1x4x32xf32>
    %17 = vector.shape_cast %16 : vector<1x4x32xf32> to vector<4x32xf32>
    %c0_10 = arith.constant 0 : index
    %c0_11 = arith.constant 0 : index
    %c0_12 = arith.constant 0 : index
    %18 = vector.load %arg3[%c0_10, %c0_11, %c0_12] : memref<2x32x128xf32, #tpu.memory_space<vmem>>, vector<1x32x128xf32>
    %19 = vector.shape_cast %18 : vector<1x32x128xf32> to vector<32x128xf32>
    %cst_13 = arith.constant dense<0.000000e+00> : vector<4x128xf32>
    %20 = tpu.matmul %17, %19, %cst_13 {dimension_numbers = #tpu.dot_dimension_numbers<[1], [0], [0], [1], [0, 0, 1, 1], [], []>} : vector<4x32xf32>, vector<32x128xf32>, vector<4x128xf32> -> vector<4x128xf32>
    %21 = arith.addf %15, %20 : vector<4x128xf32>
    %c0_14 = arith.constant 0 : index
    %c0_15 = arith.constant 0 : index
    %c0_16 = arith.constant 0 : index
    %22 = vector.load %arg4[%c0_14, %c0_15, %c0_16] : memref<2x1x128xf32, #tpu.memory_space<vmem>>, vector<1x1x128xf32>
    %23 = vector.shape_cast %22 : vector<1x1x128xf32> to vector<1x128xf32>
    %24 = vector.broadcast %23 : vector<1x128xf32> to vector<4x128xf32>
    %25 = arith.addf %21, %24 : vector<4x128xf32>
    %26 = vector.extract_strided_slice %25 {offsets = [0, 0], sizes = [4, 32], strides = [1, 1]} : vector<4x128xf32> to vector<4x32xf32>
    %27 = arith.negf %26 : vector<4x32xf32>
    %28 = math.exp %27 : vector<4x32xf32>
    %cst_17 = arith.constant 1.000000e+00 : f32
    %29 = vector.broadcast %cst_17 : f32 to vector<4x32xf32>
    %30 = arith.addf %29, %28 : vector<4x32xf32>
    %31 = arith.divf %29, %30 : vector<4x32xf32>
    %32 = vector.extract_strided_slice %25 {offsets = [0, 32], sizes = [4, 32], strides = [1, 1]} : vector<4x128xf32> to vector<4x32xf32>
    %33 = arith.negf %32 : vector<4x32xf32>
    %34 = math.exp %33 : vector<4x32xf32>
    %cst_18 = arith.constant 1.000000e+00 : f32
    %35 = vector.broadcast %cst_18 : f32 to vector<4x32xf32>
    %36 = arith.addf %35, %34 : vector<4x32xf32>
    %37 = arith.divf %35, %36 : vector<4x32xf32>
    %38 = vector.extract_strided_slice %25 {offsets = [0, 64], sizes = [4, 32], strides = [1, 1]} : vector<4x128xf32> to vector<4x32xf32>
    %39 = math.tanh %38 : vector<4x32xf32>
    %40 = vector.extract_strided_slice %25 {offsets = [0, 96], sizes = [4, 32], strides = [1, 1]} : vector<4x128xf32> to vector<4x32xf32>
    %41 = arith.negf %40 : vector<4x32xf32>
    %42 = math.exp %41 : vector<4x32xf32>
    %cst_19 = arith.constant 1.000000e+00 : f32
    %43 = vector.broadcast %cst_19 : f32 to vector<4x32xf32>
    %44 = arith.addf %43, %42 : vector<4x32xf32>
    %45 = arith.divf %43, %44 : vector<4x32xf32>
    %c0_20 = arith.constant 0 : index
    %c0_21 = arith.constant 0 : index
    %c0_22 = arith.constant 0 : index
    %46 = vector.load %arg6[%c0_20, %c0_21, %c0_22] : memref<2x4x32xf32, #tpu.memory_space<vmem>>, vector<1x4x32xf32>
    %47 = vector.shape_cast %46 : vector<1x4x32xf32> to vector<4x32xf32>
    %48 = arith.mulf %37, %47 : vector<4x32xf32>
    %49 = arith.mulf %31, %39 : vector<4x32xf32>
    %50 = arith.addf %48, %49 : vector<4x32xf32>
    %51 = math.tanh %50 : vector<4x32xf32>
    %52 = arith.mulf %45, %51 : vector<4x32xf32>
    %c0_23 = arith.constant 0 : index
    %c0_24 = arith.constant 0 : index
    %c0_25 = arith.constant 0 : index
    %53 = vector.load %arg11[%c0_23, %c0_24, %c0_25] : memref<2x4x32xf32, #tpu.memory_space<vmem>>, vector<1x4x32xf32>
    %54 = vector.shape_cast %53 : vector<1x4x32xf32> to vector<4x32xf32>
    %55 = vector.shape_cast %50 : vector<4x32xf32> to vector<1x4x32xf32>
    tpu.vector_store %arg11[%c0_23, %c0_24, %c0_25], %55 {strides = array<i32>} : memref<2x4x32xf32, #tpu.memory_space<vmem>>, vector<1x4x32xf32>,
    %c0_26 = arith.constant 0 : index
    %c0_27 = arith.constant 0 : index
    %c0_28 = arith.constant 0 : index
    %56 = vector.load %arg10[%c0_26, %c0_27, %c0_28] : memref<2x4x32xf32, #tpu.memory_space<vmem>>, vector<1x4x32xf32>
    %57 = vector.shape_cast %56 : vector<1x4x32xf32> to vector<4x32xf32>
    %58 = vector.shape_cast %52 : vector<4x32xf32> to vector<1x4x32xf32>
    tpu.vector_store %arg10[%c0_26, %c0_27, %c0_28], %58 {strides = array<i32>} : memref<2x4x32xf32, #tpu.memory_space<vmem>>, vector<1x4x32xf32>,
    %c1_29 = arith.constant 1 : index
    %c0_30 = arith.constant 0 : index
    %c0_31 = arith.constant 0 : index
    %59 = vector.load %arg2[%c1_29, %c0_30, %c0_31] : memref<2x32x128xf32, #tpu.memory_space<vmem>>, vector<1x32x128xf32>
    %60 = vector.shape_cast %59 : vector<1x32x128xf32> to vector<32x128xf32>
    %cst_32 = arith.constant dense<0.000000e+00> : vector<4x128xf32>
    %61 = tpu.matmul %52, %60, %cst_32 {dimension_numbers = #tpu.dot_dimension_numbers<[1], [0], [0], [1], [0, 0, 1, 1], [], []>} : vector<4x32xf32>, vector<32x128xf32>, vector<4x128xf32> -> vector<4x128xf32>
    %c1_33 = arith.constant 1 : index
    %c0_34 = arith.constant 0 : index
    %c0_35 = arith.constant 0 : index
    %62 = vector.load %arg5[%c1_33, %c0_34, %c0_35] : memref<2x4x32xf32, #tpu.memory_space<vmem>>, vector<1x4x32xf32>
    %63 = vector.shape_cast %62 : vector<1x4x32xf32> to vector<4x32xf32>
    %c1_36 = arith.constant 1 : index
    %c0_37 = arith.constant 0 : index
    %c0_38 = arith.constant 0 : index
    %64 = vector.load %arg3[%c1_36, %c0_37, %c0_38] : memref<2x32x128xf32, #tpu.memory_space<vmem>>, vector<1x32x128xf32>
    %65 = vector.shape_cast %64 : vector<1x32x128xf32> to vector<32x128xf32>
    %cst_39 = arith.constant dense<0.000000e+00> : vector<4x128xf32>
    %66 = tpu.matmul %63, %65, %cst_39 {dimension_numbers = #tpu.dot_dimension_numbers<[1], [0], [0], [1], [0, 0, 1, 1], [], []>} : vector<4x32xf32>, vector<32x128xf32>, vector<4x128xf32> -> vector<4x128xf32>
    %67 = arith.addf %61, %66 : vector<4x128xf32>
    %c1_40 = arith.constant 1 : index
    %c0_41 = arith.constant 0 : index
    %c0_42 = arith.constant 0 : index
    %68 = vector.load %arg4[%c1_40, %c0_41, %c0_42] : memref<2x1x128xf32, #tpu.memory_space<vmem>>, vector<1x1x128xf32>
    %69 = vector.shape_cast %68 : vector<1x1x128xf32> to vector<1x128xf32>
    %70 = vector.broadcast %69 : vector<1x128xf32> to vector<4x128xf32>
    %71 = arith.addf %67, %70 : vector<4x128xf32>
    %72 = vector.extract_strided_slice %71 {offsets = [0, 0], sizes = [4, 32], strides = [1, 1]} : vector<4x128xf32> to vector<4x32xf32>
    %73 = arith.negf %72 : vector<4x32xf32>
    %74 = math.exp %73 : vector<4x32xf32>
    %cst_43 = arith.constant 1.000000e+00 : f32
    %75 = vector.broadcast %cst_43 : f32 to vector<4x32xf32>
    %76 = arith.addf %75, %74 : vector<4x32xf32>
    %77 = arith.divf %75, %76 : vector<4x32xf32>
    %78 = vector.extract_strided_slice %71 {offsets = [0, 32], sizes = [4, 32], strides = [1, 1]} : vector<4x128xf32> to vector<4x32xf32>
    %79 = arith.negf %78 : vector<4x32xf32>
    %80 = math.exp %79 : vector<4x32xf32>
    %cst_44 = arith.constant 1.000000e+00 : f32
    %81 = vector.broadcast %cst_44 : f32 to vector<4x32xf32>
    %82 = arith.addf %81, %80 : vector<4x32xf32>
    %83 = arith.divf %81, %82 : vector<4x32xf32>
    %84 = vector.extract_strided_slice %71 {offsets = [0, 64], sizes = [4, 32], strides = [1, 1]} : vector<4x128xf32> to vector<4x32xf32>
    %85 = math.tanh %84 : vector<4x32xf32>
    %86 = vector.extract_strided_slice %71 {offsets = [0, 96], sizes = [4, 32], strides = [1, 1]} : vector<4x128xf32> to vector<4x32xf32>
    %87 = arith.negf %86 : vector<4x32xf32>
    %88 = math.exp %87 : vector<4x32xf32>
    %cst_45 = arith.constant 1.000000e+00 : f32
    %89 = vector.broadcast %cst_45 : f32 to vector<4x32xf32>
    %90 = arith.addf %89, %88 : vector<4x32xf32>
    %91 = arith.divf %89, %90 : vector<4x32xf32>
    %c1_46 = arith.constant 1 : index
    %c0_47 = arith.constant 0 : index
    %c0_48 = arith.constant 0 : index
    %92 = vector.load %arg6[%c1_46, %c0_47, %c0_48] : memref<2x4x32xf32, #tpu.memory_space<vmem>>, vector<1x4x32xf32>
    %93 = vector.shape_cast %92 : vector<1x4x32xf32> to vector<4x32xf32>
    %94 = arith.mulf %83, %93 : vector<4x32xf32>
    %95 = arith.mulf %77, %85 : vector<4x32xf32>
    %96 = arith.addf %94, %95 : vector<4x32xf32>
    %97 = math.tanh %96 : vector<4x32xf32>
    %98 = arith.mulf %91, %97 : vector<4x32xf32>
    %c1_49 = arith.constant 1 : index
    %c0_50 = arith.constant 0 : index
    %c0_51 = arith.constant 0 : index
    %99 = vector.load %arg11[%c1_49, %c0_50, %c0_51] : memref<2x4x32xf32, #tpu.memory_space<vmem>>, vector<1x4x32xf32>
    %100 = vector.shape_cast %99 : vector<1x4x32xf32> to vector<4x32xf32>
    %101 = vector.shape_cast %96 : vector<4x32xf32> to vector<1x4x32xf32>
    tpu.vector_store %arg11[%c1_49, %c0_50, %c0_51], %101 {strides = array<i32>} : memref<2x4x32xf32, #tpu.memory_space<vmem>>, vector<1x4x32xf32>,
    %c1_52 = arith.constant 1 : index
    %c0_53 = arith.constant 0 : index
    %c0_54 = arith.constant 0 : index
    %102 = vector.load %arg10[%c1_52, %c0_53, %c0_54] : memref<2x4x32xf32, #tpu.memory_space<vmem>>, vector<1x4x32xf32>
    %103 = vector.shape_cast %102 : vector<1x4x32xf32> to vector<4x32xf32>
    %104 = vector.shape_cast %98 : vector<4x32xf32> to vector<1x4x32xf32>
    tpu.vector_store %arg10[%c1_52, %c0_53, %c0_54], %104 {strides = array<i32>} : memref<2x4x32xf32, #tpu.memory_space<vmem>>, vector<1x4x32xf32>,
    %c0_55 = arith.constant 0 : index
    %c0_56 = arith.constant 0 : index
    %105 = vector.load %arg7[%c0_55, %c0_56] : memref<32x128xf32, #tpu.memory_space<vmem>>, vector<32x128xf32>
    %cst_57 = arith.constant dense<0.000000e+00> : vector<4x128xf32>
    %106 = tpu.matmul %98, %105, %cst_57 {dimension_numbers = #tpu.dot_dimension_numbers<[1], [0], [0], [1], [0, 0, 1, 1], [], []>} : vector<4x32xf32>, vector<32x128xf32>, vector<4x128xf32> -> vector<4x128xf32>
    %c0_58 = arith.constant 0 : index
    %c0_59 = arith.constant 0 : index
    %107 = vector.load %arg8[%c0_58, %c0_59] : memref<1x128xf32, #tpu.memory_space<vmem>>, vector<1x128xf32>
    %108 = vector.broadcast %107 : vector<1x128xf32> to vector<4x128xf32>
    %109 = arith.addf %106, %108 : vector<4x128xf32>
    %c0_60 = arith.constant 0 : index
    %c0_61 = arith.constant 0 : index
    %110 = vector.load %arg9[%c0_60, %c0_61] : memref<4x128xf32, #tpu.memory_space<vmem>>, vector<4x128xf32>
    tpu.vector_store %arg9[%c0_60, %c0_61], %109 {strides = array<i32>} : memref<4x128xf32, #tpu.memory_space<vmem>>, vector<4x128xf32>,
    return
  }
}

</mosaic_0001>

<llo_original>
// kernel: decoder_lstm_forward.1
$region0: #{decoder_lstm_forward.1}
  #allocation0 [shape = 'u32[]', space=smem, size = 0x4, offset = 0x4, fixed_abs, tag = 'smem constant byte address 0x4 - core index']
  #allocation1 [shape = 'u32[144,128]{1,0:T(1,128)}', space=vmem, size = 0x12000, scoped, tag = 'internal scratch']
  %s0 = inlined_call_operand.hbm [shape: s32[4], index: 0, kind: input, shape index: {}]
  %s1 = inlined_call_operand.vmem [shape: f32[50,32], index: 1, kind: input, shape index: {}]
  %s2 = inlined_call_operand.vmem [shape: f32[2,32,128], index: 2, kind: input, shape index: {}]
  %s3 = inlined_call_operand.hbm [shape: f32[2,32,128], index: 3, kind: input, shape index: {}]
  %s4 = inlined_call_operand.vmem [shape: f32[2,1,128], index: 4, kind: input, shape index: {}]
  %s5 = inlined_call_operand.vmem [shape: f32[2,4,32], index: 5, kind: input, shape index: {}, may-alias: {5,10}]
  %s6 = inlined_call_operand.vmem [shape: f32[2,4,32], index: 6, kind: input, shape index: {}, may-alias: {6,11}]
  %s7 = inlined_call_operand.vmem [shape: f32[32,128], index: 7, kind: input, shape index: {}]
  %s8 = inlined_call_operand.hbm [shape: f32[1,128], index: 8, kind: input, shape index: {}]
  %s9 = inlined_call_operand.hbm [shape: f32[4,128], index: 9, kind: output, shape index: {0}]
  %s10 = inlined_call_operand.vmem [shape: f32[2,4,32], index: 10, kind: output, shape index: {1}, may-alias: {5,10}]
  %s11 = inlined_call_operand.vmem [shape: f32[2,4,32], index: 11, kind: output, shape index: {2}, may-alias: {6,11}]
  %12 = xla_tuple %s9, %s10, %s11
  %s13 = sld [smem:[#allocation0]]
  $region74: #{decoder_lstm_forward.1} parent=0
    _
  %s15 = ssub.s32 1, %s13
  %s16 = scalar_select 0, %s15, %s13
  $region1: #{decoder_lstm_forward.1} parent=0
    #allocation2 [shape = 'u8[512]{0}', space=smem, size = 0x200, scoped, tag = 'input window, operand 0, single buffered']
    #allocation3 [shape = 's32[1]{0}', space=sflag, size = 0x4, scoped, tag = 'scoped memory for decoder_lstm_forward.1']
    #allocation4 [shape = 's32[1]{0}', space=sflag, size = 0x4, scoped, tag = 'scoped memory for decoder_lstm_forward.1']
    #allocation5 [shape = 's32[1]{0}', space=sflag, size = 0x4, scoped, tag = 'scoped memory for decoder_lstm_forward.1']
    #allocation6 [shape = 'u8[32768]{0}', space=vmem, size = 0x8000, scoped, tag = 'input window, operand 3, single buffered']
    #allocation7 [shape = 'u8[512]{0}', space=vmem, size = 0x400, scoped, tag = 'input window, operand 8, single buffered']
    #allocation8 [shape = 's32[1]{0}', space=sflag, size = 0x4, scoped, tag = 'scoped memory for decoder_lstm_forward.1']
    #allocation9 [shape = 'u8[2048]{0}', space=vmem, size = 0x800, scoped, tag = 'output window, operand 0, single buffered']
    %17 = vsyncpa [#allocation5], 0
    %18 = vsyncpa [#allocation3], 0
    %19 = vsyncpa [#allocation8], 0
    %20 = vsyncpa [#allocation4], 0
    // Predicated region
    $region2: #{decoder_lstm_forward.1} parent=1 // pred_check
      _
    $region3: #{decoder_lstm_forward.1} parent=1 // pred_check_branch
      %22 = sbr.rel (0) target = $region5
    $region4: #{decoder_lstm_forward.1} parent=1 // pred_region
      %s24 = ssub.s32 16, 16
      %25 = vsyncadd [#allocation5], %s24
      %28 = dma.hbm_to_smem %s0, 16, [#allocation2], [#allocation5]
    $region5: #{decoder_lstm_forward.1} parent=1 // pred_fallthru
      _
    // Predicated region
    $region6: #{decoder_lstm_forward.1} parent=1 // pred_check
      _
    $region7: #{decoder_lstm_forward.1} parent=1 // pred_check_branch
      %30 = sbr.rel (0) target = $region9
    $region8: #{decoder_lstm_forward.1} parent=1 // pred_region
      _
    $region9: #{decoder_lstm_forward.1} parent=1 // pred_fallthru
      _
    // Predicated region
    $region10: #{decoder_lstm_forward.1} parent=1 // pred_check
      _
    $region11: #{decoder_lstm_forward.1} parent=1 // pred_check_branch
      %32 = sbr.rel (0) target = $region13
    $region12: #{decoder_lstm_forward.1} parent=1 // pred_region
      _
    $region13: #{decoder_lstm_forward.1} parent=1 // pred_fallthru
      _
    // Predicated region
    $region14: #{decoder_lstm_forward.1} parent=1 // pred_check
      _
    $region15: #{decoder_lstm_forward.1} parent=1 // pred_check_branch
      %34 = sbr.rel (0) target = $region17
    $region16: #{decoder_lstm_forward.1} parent=1 // pred_region
      %s36 = ssub.s32 1024, 1024
      %37 = vsyncadd [#allocation3], %s36
      %s38 = sshll.u32 [#allocation6], 4
      %s39 = int_to_ptr.vmem [resolvable:$true] %s38
      %44 = dma.hbm_to_vmem [thread:$0]  %s3, 1024, %s39, [#allocation3], 128, 128, 8
    $region17: #{decoder_lstm_forward.1} parent=1 // pred_fallthru
      _
    // Predicated region
    $region18: #{decoder_lstm_forward.1} parent=1 // pred_check
      _
    $region19: #{decoder_lstm_forward.1} parent=1 // pred_check_branch
      %46 = sbr.rel (0) target = $region21
    $region20: #{decoder_lstm_forward.1} parent=1 // pred_region
      _
    $region21: #{decoder_lstm_forward.1} parent=1 // pred_fallthru
      _
    // Predicated region
    $region22: #{decoder_lstm_forward.1} parent=1 // pred_check
      _
    $region23: #{decoder_lstm_forward.1} parent=1 // pred_check_branch
      %48 = sbr.rel (0) target = $region25
    $region24: #{decoder_lstm_forward.1} parent=1 // pred_region
      _
    $region25: #{decoder_lstm_forward.1} parent=1 // pred_fallthru
      _
    // Predicated region
    $region26: #{decoder_lstm_forward.1} parent=1 // pred_check
      _
    $region27: #{decoder_lstm_forward.1} parent=1 // pred_check_branch
      %50 = sbr.rel (0) target = $region29
    $region28: #{decoder_lstm_forward.1} parent=1 // pred_region
      _
    $region29: #{decoder_lstm_forward.1} parent=1 // pred_fallthru
      _
    // Predicated region
    $region30: #{decoder_lstm_forward.1} parent=1 // pred_check
      _
    $region31: #{decoder_lstm_forward.1} parent=1 // pred_check_branch
      %52 = sbr.rel (0) target = $region33
    $region32: #{decoder_lstm_forward.1} parent=1 // pred_region
      _
    $region33: #{decoder_lstm_forward.1} parent=1 // pred_fallthru
      _
    // Predicated region
    $region34: #{decoder_lstm_forward.1} parent=1 // pred_check
      _
    $region35: #{decoder_lstm_forward.1} parent=1 // pred_check_branch
      %54 = sbr.rel (0) target = $region37
    $region36: #{decoder_lstm_forward.1} parent=1 // pred_region
      %s56 = ssub.s32 16, 16
      %57 = vsyncadd [#allocation8], %s56
      %s59 = sshll.u32 [#allocation7], 4
      %s60 = int_to_ptr.vmem [resolvable:$true] %s59
      %62 = dma.hbm_to_vmem [thread:$0]  %s8, 16, %s60, [#allocation8]
    $region37: #{decoder_lstm_forward.1} parent=1 // pred_fallthru
      _
    // Predicated region
    $region38: #{decoder_lstm_forward.1} parent=1 // pred_check
      _
    $region39: #{decoder_lstm_forward.1} parent=1 // pred_check_branch
      %64 = sbr.rel (0) target = $region41
    $region40: #{decoder_lstm_forward.1} parent=1 // pred_region
      %65 = dma.done [#allocation5], 16
    $region41: #{decoder_lstm_forward.1} parent=1 // pred_fallthru
      _
    // Predicated region
    $region42: #{decoder_lstm_forward.1} parent=1 // pred_check
      _
    $region43: #{decoder_lstm_forward.1} parent=1 // pred_check_branch
      %67 = sbr.rel (0) target = $region45
    $region44: #{decoder_lstm_forward.1} parent=1 // pred_region
      %68 = dma.done [#allocation3], 1024
    $region45: #{decoder_lstm_forward.1} parent=1 // pred_fallthru
      _
    // Predicated region
    $region46: #{decoder_lstm_forward.1} parent=1 // pred_check
      _
    $region47: #{decoder_lstm_forward.1} parent=1 // pred_check_branch
      %70 = sbr.rel (0) target = $region49
    $region48: #{decoder_lstm_forward.1} parent=1 // pred_region
      %71 = dma.done [#allocation8], 16
    $region49: #{decoder_lstm_forward.1} parent=1 // pred_fallthru
      _
    %72 = sfence
    %s73 = sld [smem:[#allocation2]]
    %s74 = scalar_lea.vmem %s1, %s73
    %v75 = vld [vmem:[%s74] sm:$0x1]
    %s76 = sld [smem:[#allocation2 + $0x1]]
    %s77 = scalar_lea.vmem %s1, %s76
    %v78 = vld [vmem:[%s77] sm:$0x1]
    %s79 = sld [smem:[#allocation2 + $0x2]]
    %s80 = scalar_lea.vmem %s1, %s79
    %v81 = vld [vmem:[%s80] sm:$0x1]
    %s82 = sld [smem:[#allocation2 + $0x3]]
    %s83 = scalar_lea.vmem %s1, %s82
    %v84 = vld [vmem:[%s83] sm:$0x1]
    %v86 = vrot.slane %v78, 7
    %v89 = vrot.slane %v81, 6
    %v92 = vrot.slane %v84, 5
    %vm94 = vcmask 1040384
    %v95 = vsel %vm94, %v75, %v86
    %vm96 = vcmask 1041408
    %v97 = vsel %vm96, %v95, %v89
    %vm98 = vcmask 1042432
    %v99 = vsel %vm98, %v97, %v92
    %v100 = vld [vmem:[%s2] sm:$0xff]
    %v101 = vld [vmem:[%s2 + $0x8] sm:$0xff]
    %v102 = vld [vmem:[%s2 + $0x10] sm:$0xff]
    %v103 = vld [vmem:[%s2 + $0x18] sm:$0xff]
    %v104 = vld [vmem:[%s5] sm:$0xf]
    %v105 = vld [vmem:[#allocation6] sm:$0xff]
    %v106 = vld [vmem:[#allocation6 + $0x8] sm:$0xff]
    %v107 = vld [vmem:[#allocation6 + $0x10] sm:$0xff]
    %v108 = vld [vmem:[#allocation6 + $0x18] sm:$0xff]
    %vm109 = vcmask 261120
    %v111 = vsel %vm109, %v104, 0
    %113 = vmatprep.subr.mxu0 0.0
    %114 = vmatpush1.msra.mxu0 %v105
    %115 = vmatprep.subr.mxu0 0.0
    %116 = vmatpush1.msra.mxu0 %v106
    %117 = vmatprep.subr.mxu0 0.0
    %118 = vmatpush1.msra.mxu0 %v107
    %119 = vmatprep.subr.mxu0 0.0
    %120 = vmatpush1.msra.mxu0 %v108
    %121 = vmatprep.subr.mxu0 0.0
    %122 = vmatpush1.msra.mxu0 0.0
    %123 = vmatprep.subr.mxu0 0.0
    %124 = vmatpush1.msra.mxu0 0.0
    %125 = vmatprep.subr.mxu0 0.0
    %126 = vmatpush1.msra.mxu0 0.0
    %127 = vmatprep.subr.mxu0 0.0
    %128 = vmatpush1.msra.mxu0 0.0
    %129 = vmatprep.subr.mxu0 0.0
    %130 = vmatpush1.msra.mxu0 0.0
    %131 = vmatprep.subr.mxu0 0.0
    %132 = vmatpush1.msra.mxu0 0.0
    %133 = vmatprep.subr.mxu0 0.0
    %134 = vmatpush1.msra.mxu0 0.0
    %135 = vmatprep.subr.mxu0 0.0
    %136 = vmatpush1.msra.mxu0 0.0
    %137 = vmatprep.subr.mxu0 0.0
    %138 = vmatpush1.msra.mxu0 0.0
    %139 = vmatprep.subr.mxu0 0.0
    %140 = vmatpush1.msra.mxu0 0.0
    %141 = vmatprep.subr.mxu0 0.0
    %142 = vmatpush1.msra.mxu0 0.0
    %143 = vmatprep.subr.mxu0 0.0
    %144 = vmatpush1.msra.mxu0 0.0
    %145 = vmatprep.subr.mxu0 0.0
    %146 = vmatpush1.msra.mxu0 0.0
    %147 = vmatprep.subr.mxu0 0.0
    %148 = vmatpush1.msra.mxu0 0.0
    %149 = vmatprep.subr.mxu0 0.0
    %150 = vmatpush1.msra.mxu0 0.0
    %151 = vmatprep.subr.mxu0 0.0
    %152 = vmatpush1.msra.mxu0 0.0
    %153 = vmatprep.subr.mxu0 0.0
    %154 = vmatpush1.msra.mxu0 0.0
    %155 = vmatprep.subr.mxu0 0.0
    %156 = vmatpush1.msra.mxu0 0.0
    %157 = vmatprep.subr.mxu0 0.0
    %158 = vmatpush1.msra.mxu0 0.0
    %159 = vmatprep.subr.mxu0 0.0
    %160 = vmatpush1.msra.mxu0 0.0
    %161 = vmatprep.subr.mxu0 0.0
    %162 = vmatpush1.msra.mxu0 0.0
    %163 = vmatprep.subr.mxu0 0.0
    %164 = vmatpush1.msra.mxu0 0.0
    %165 = vmatprep.subr.mxu0 0.0
    %166 = vmatpush1.msra.mxu0 0.0
    %167 = vmatprep.subr.mxu0 0.0
    %168 = vmatpush1.msra.mxu0 0.0
    %169 = vmatprep.subr.mxu0 0.0
    %170 = vmatpush1.msra.mxu0 0.0
    %171 = vmatprep.subr.mxu0 0.0
    %172 = vmatpush1.msra.mxu0 0.0
    %173 = vmatprep.subr.mxu0 0.0
    %174 = vmatpush1.msra.mxu0 0.0
    %175 = vmatprep.subr.mxu0 0.0
    %176 = vmatpush1.msra.mxu0 0.0
    %177 = vmatprep.mubr.f32.mxu0 0.0
    %178 = vmatmul.mubr.f32.gmra.mrb[0].mxu0 %v111
    %v179 = vpop.f32.mrb[0].mxu0
    %v180 = vadd.f32 0.0, %v179
    %v181 = vpop.f32.mrb[0].mxu0
    %182 = vdwg.mxu0
    %v184 = vsel %vm109, %v99, 0
    %186 = vmatprep.subr.mxu0 0.0
    %187 = vmatpush1.msra.mxu0 %v100
    %188 = vmatprep.subr.mxu0 0.0
    %189 = vmatpush1.msra.mxu0 %v101
    %190 = vmatprep.subr.mxu0 0.0
    %191 = vmatpush1.msra.mxu0 %v102
    %192 = vmatprep.subr.mxu0 0.0
    %193 = vmatpush1.msra.mxu0 %v103
    %194 = vmatprep.subr.mxu0 0.0
    %195 = vmatpush1.msra.mxu0 0.0
    %196 = vmatprep.subr.mxu0 0.0
    %197 = vmatpush1.msra.mxu0 0.0
    %198 = vmatprep.subr.mxu0 0.0
    %199 = vmatpush1.msra.mxu0 0.0
    %200 = vmatprep.subr.mxu0 0.0
    %201 = vmatpush1.msra.mxu0 0.0
    %202 = vmatprep.subr.mxu0 0.0
    %203 = vmatpush1.msra.mxu0 0.0
    %204 = vmatprep.subr.mxu0 0.0
    %205 = vmatpush1.msra.mxu0 0.0
    %206 = vmatprep.subr.mxu0 0.0
    %207 = vmatpush1.msra.mxu0 0.0
    %208 = vmatprep.subr.mxu0 0.0
    %209 = vmatpush1.msra.mxu0 0.0
    %210 = vmatprep.subr.mxu0 0.0
    %211 = vmatpush1.msra.mxu0 0.0
    %212 = vmatprep.subr.mxu0 0.0
    %213 = vmatpush1.msra.mxu0 0.0
    %214 = vmatprep.subr.mxu0 0.0
    %215 = vmatpush1.msra.mxu0 0.0
    %216 = vmatprep.subr.mxu0 0.0
    %217 = vmatpush1.msra.mxu0 0.0
    %218 = vmatprep.subr.mxu0 0.0
    %219 = vmatpush1.msra.mxu0 0.0
    %220 = vmatprep.subr.mxu0 0.0
    %221 = vmatpush1.msra.mxu0 0.0
    %222 = vmatprep.subr.mxu0 0.0
    %223 = vmatpush1.msra.mxu0 0.0
    %224 = vmatprep.subr.mxu0 0.0
    %225 = vmatpush1.msra.mxu0 0.0
    %226 = vmatprep.subr.mxu0 0.0
    %227 = vmatpush1.msra.mxu0 0.0
    %228 = vmatprep.subr.mxu0 0.0
    %229 = vmatpush1.msra.mxu0 0.0
    %230 = vmatprep.subr.mxu0 0.0
    %231 = vmatpush1.msra.mxu0 0.0
    %232 = vmatprep.subr.mxu0 0.0
    %233 = vmatpush1.msra.mxu0 0.0
    %234 = vmatprep.subr.mxu0 0.0
    %235 = vmatpush1.msra.mxu0 0.0
    %236 = vmatprep.subr.mxu0 0.0
    %237 = vmatpush1.msra.mxu0 0.0
    %238 = vmatprep.subr.mxu0 0.0
    %239 = vmatpush1.msra.mxu0 0.0
    %240 = vmatprep.subr.mxu0 0.0
    %241 = vmatpush1.msra.mxu0 0.0
    %242 = vmatprep.subr.mxu0 0.0
    %243 = vmatpush1.msra.mxu0 0.0
    %244 = vmatprep.subr.mxu0 0.0
    %245 = vmatpush1.msra.mxu0 0.0
    %246 = vmatprep.subr.mxu0 0.0
    %247 = vmatpush1.msra.mxu0 0.0
    %248 = vmatprep.subr.mxu0 0.0
    %249 = vmatpush1.msra.mxu0 0.0
    %250 = vmatprep.mubr.f32.mxu0 0.0
    %251 = vmatmul.mubr.f32.gmra.mrb[0].mxu0 %v184
    %v252 = vpop.f32.mrb[0].mxu0
    %v253 = vadd.f32 %v180, %v252
    %v254 = vpop.f32.mrb[0].mxu0
    %255 = vdwg.mxu0
    %v256 = vld [vmem:[%s4] sm:$0x1]
    %v258 = vlaneseq
    %v259 = vshrl.u32 %v258, 7
    %v260 = vsub.s32 0, %v259
    %v261 = vrot.slane %v256, %v260
    %v263 = vadd.f32 %v253, %v261
    %v264 = vxor.u32 %v263, 2147483648
    %v265 = vmul.f32 %v264, 1.442695
    %v266 = vpow.pop %v265
    %v267 = vadd.f32 %v266, 1.0
    %v268 = vrcp.pop %v267
    %v269 = vmul.f32 1.0, %v268
    %v270 = vtanh.pop %v263
    %v271 = vld [vmem:[%s6] sm:$0xf]
    %273 = vrot.lane.b32.xlu0 %v271, 32
    %v274 = vpop.permute.xlu0 %273
    %v276 = vmul.f32 %v269, %v274
    %278 = vrot.lane.b32.xlu0 %v270, 64
    %v279 = vpop.permute.xlu0 %278
    %v281 = vmul.f32 %v269, %v279
    %283 = vrot.lane.b32.xlu0 %v281, 32
    %v284 = vpop.permute.xlu0 %283
    %v286 = vadd.f32 %v276, %v284
    %v287 = vtanh.pop %v286
    %289 = vrot.lane.b32.xlu0 %v287, 64
    %v290 = vpop.permute.xlu0 %289
    %v292 = vmul.f32 %v269, %v290
    %294 = vrot.lane.b32.xlu0 %v286, 96
    %v295 = vpop.permute.xlu0 %294
    %vm297 = vcmask 257024
    %298 = vst.msk [vmem:[%s11] sm:$0xf] %vm297, %v295
    %300 = vrot.lane.b32.xlu0 %v292, 32
    %v301 = vpop.permute.xlu0 %300
    %303 = vst.msk [vmem:[%s10] sm:$0xf] %vm297, %v301
    %s304 = scalar_lea.vmem %s2, 32
    %v305 = vld [vmem:[%s304] sm:$0xff]
    %v306 = vld [vmem:[%s304 + $0x8] sm:$0xff]
    %v307 = vld [vmem:[%s304 + $0x10] sm:$0xff]
    %v308 = vld [vmem:[%s304 + $0x18] sm:$0xff]
    %s309 = scalar_lea.vmem %s5, 4
    %v310 = vld [vmem:[%s309] sm:$0xf]
    %s311 = scalar_lea.vmem [#allocation6], 32
    %v312 = vld [vmem:[%s311] sm:$0xff]
    %v313 = vld [vmem:[%s311 + $0x8] sm:$0xff]
    %v314 = vld [vmem:[%s311 + $0x10] sm:$0xff]
    %v315 = vld [vmem:[%s311 + $0x18] sm:$0xff]
    %v317 = vsel %vm109, %v310, 0
    %319 = vmatprep.subr.mxu0 0.0
    %320 = vmatpush1.msra.mxu0 %v312
    %321 = vmatprep.subr.mxu0 0.0
    %322 = vmatpush1.msra.mxu0 %v313
    %323 = vmatprep.subr.mxu0 0.0
    %324 = vmatpush1.msra.mxu0 %v314
    %325 = vmatprep.subr.mxu0 0.0
    %326 = vmatpush1.msra.mxu0 %v315
    %327 = vmatprep.subr.mxu0 0.0
    %328 = vmatpush1.msra.mxu0 0.0
    %329 = vmatprep.subr.mxu0 0.0
    %330 = vmatpush1.msra.mxu0 0.0
    %331 = vmatprep.subr.mxu0 0.0
    %332 = vmatpush1.msra.mxu0 0.0
    %333 = vmatprep.subr.mxu0 0.0
    %334 = vmatpush1.msra.mxu0 0.0
    %335 = vmatprep.subr.mxu0 0.0
    %336 = vmatpush1.msra.mxu0 0.0
    %337 = vmatprep.subr.mxu0 0.0
    %338 = vmatpush1.msra.mxu0 0.0
    %339 = vmatprep.subr.mxu0 0.0
    %340 = vmatpush1.msra.mxu0 0.0
    %341 = vmatprep.subr.mxu0 0.0
    %342 = vmatpush1.msra.mxu0 0.0
    %343 = vmatprep.subr.mxu0 0.0
    %344 = vmatpush1.msra.mxu0 0.0
    %345 = vmatprep.subr.mxu0 0.0
    %346 = vmatpush1.msra.mxu0 0.0
    %347 = vmatprep.subr.mxu0 0.0
    %348 = vmatpush1.msra.mxu0 0.0
    %349 = vmatprep.subr.mxu0 0.0
    %350 = vmatpush1.msra.mxu0 0.0
    %351 = vmatprep.subr.mxu0 0.0
    %352 = vmatpush1.msra.mxu0 0.0
    %353 = vmatprep.subr.mxu0 0.0
    %354 = vmatpush1.msra.mxu0 0.0
    %355 = vmatprep.subr.mxu0 0.0
    %356 = vmatpush1.msra.mxu0 0.0
    %357 = vmatprep.subr.mxu0 0.0
    %358 = vmatpush1.msra.mxu0 0.0
    %359 = vmatprep.subr.mxu0 0.0
    %360 = vmatpush1.msra.mxu0 0.0
    %361 = vmatprep.subr.mxu0 0.0
    %362 = vmatpush1.msra.mxu0 0.0
    %363 = vmatprep.subr.mxu0 0.0
    %364 = vmatpush1.msra.mxu0 0.0
    %365 = vmatprep.subr.mxu0 0.0
    %366 = vmatpush1.msra.mxu0 0.0
    %367 = vmatprep.subr.mxu0 0.0
    %368 = vmatpush1.msra.mxu0 0.0
    %369 = vmatprep.subr.mxu0 0.0
    %370 = vmatpush1.msra.mxu0 0.0
    %371 = vmatprep.subr.mxu0 0.0
    %372 = vmatpush1.msra.mxu0 0.0
    %373 = vmatprep.subr.mxu0 0.0
    %374 = vmatpush1.msra.mxu0 0.0
    %375 = vmatprep.subr.mxu0 0.0
    %376 = vmatpush1.msra.mxu0 0.0
    %377 = vmatprep.subr.mxu0 0.0
    %378 = vmatpush1.msra.mxu0 0.0
    %379 = vmatprep.subr.mxu0 0.0
    %380 = vmatpush1.msra.mxu0 0.0
    %381 = vmatprep.subr.mxu0 0.0
    %382 = vmatpush1.msra.mxu0 0.0
    %383 = vmatprep.mubr.f32.mxu0 0.0
    %384 = vmatmul.mubr.f32.gmra.mrb[0].mxu0 %v317
    %v385 = vpop.f32.mrb[0].mxu0
    %v386 = vadd.f32 0.0, %v385
    %v387 = vpop.f32.mrb[0].mxu0
    %388 = vdwg.mxu0
    %v389 = vsel %vm109, %v301, 0
    %391 = vmatprep.subr.mxu0 0.0
    %392 = vmatpush1.msra.mxu0 %v305
    %393 = vmatprep.subr.mxu0 0.0
    %394 = vmatpush1.msra.mxu0 %v306
    %395 = vmatprep.subr.mxu0 0.0
    %396 = vmatpush1.msra.mxu0 %v307
    %397 = vmatprep.subr.mxu0 0.0
    %398 = vmatpush1.msra.mxu0 %v308
    %399 = vmatprep.subr.mxu0 0.0
    %400 = vmatpush1.msra.mxu0 0.0
    %401 = vmatprep.subr.mxu0 0.0
    %402 = vmatpush1.msra.mxu0 0.0
    %403 = vmatprep.subr.mxu0 0.0
    %404 = vmatpush1.msra.mxu0 0.0
    %405 = vmatprep.subr.mxu0 0.0
    %406 = vmatpush1.msra.mxu0 0.0
    %407 = vmatprep.subr.mxu0 0.0
    %408 = vmatpush1.msra.mxu0 0.0
    %409 = vmatprep.subr.mxu0 0.0
    %410 = vmatpush1.msra.mxu0 0.0
    %411 = vmatprep.subr.mxu0 0.0
    %412 = vmatpush1.msra.mxu0 0.0
    %413 = vmatprep.subr.mxu0 0.0
    %414 = vmatpush1.msra.mxu0 0.0
    %415 = vmatprep.subr.mxu0 0.0
    %416 = vmatpush1.msra.mxu0 0.0
    %417 = vmatprep.subr.mxu0 0.0
    %418 = vmatpush1.msra.mxu0 0.0
    %419 = vmatprep.subr.mxu0 0.0
    %420 = vmatpush1.msra.mxu0 0.0
    %421 = vmatprep.subr.mxu0 0.0
    %422 = vmatpush1.msra.mxu0 0.0
    %423 = vmatprep.subr.mxu0 0.0
    %424 = vmatpush1.msra.mxu0 0.0
    %425 = vmatprep.subr.mxu0 0.0
    %426 = vmatpush1.msra.mxu0 0.0
    %427 = vmatprep.subr.mxu0 0.0
    %428 = vmatpush1.msra.mxu0 0.0
    %429 = vmatprep.subr.mxu0 0.0
    %430 = vmatpush1.msra.mxu0 0.0
    %431 = vmatprep.subr.mxu0 0.0
    %432 = vmatpush1.msra.mxu0 0.0
    %433 = vmatprep.subr.mxu0 0.0
    %434 = vmatpush1.msra.mxu0 0.0
    %435 = vmatprep.subr.mxu0 0.0
    %436 = vmatpush1.msra.mxu0 0.0
    %437 = vmatprep.subr.mxu0 0.0
    %438 = vmatpush1.msra.mxu0 0.0
    %439 = vmatprep.subr.mxu0 0.0
    %440 = vmatpush1.msra.mxu0 0.0
    %441 = vmatprep.subr.mxu0 0.0
    %442 = vmatpush1.msra.mxu0 0.0
    %443 = vmatprep.subr.mxu0 0.0
    %444 = vmatpush1.msra.mxu0 0.0
    %445 = vmatprep.subr.mxu0 0.0
    %446 = vmatpush1.msra.mxu0 0.0
    %447 = vmatprep.subr.mxu0 0.0
    %448 = vmatpush1.msra.mxu0 0.0
    %449 = vmatprep.subr.mxu0 0.0
    %450 = vmatpush1.msra.mxu0 0.0
    %451 = vmatprep.subr.mxu0 0.0
    %452 = vmatpush1.msra.mxu0 0.0
    %453 = vmatprep.subr.mxu0 0.0
    %454 = vmatpush1.msra.mxu0 0.0
    %455 = vmatprep.mubr.f32.mxu0 0.0
    %456 = vmatmul.mubr.f32.gmra.mrb[0].mxu0 %v389
    %v457 = vpop.f32.mrb[0].mxu0
    %v458 = vadd.f32 %v386, %v457
    %v459 = vpop.f32.mrb[0].mxu0
    %460 = vdwg.mxu0
    %s461 = scalar_lea.vmem %s4, 1
    %v462 = vld [vmem:[%s461] sm:$0x1]
    %v464 = vlaneseq
    %v465 = vshrl.u32 %v464, 7
    %v466 = vsub.s32 0, %v465
    %v467 = vrot.slane %v462, %v466
    %v469 = vadd.f32 %v458, %v467
    %v470 = vxor.u32 %v469, 2147483648
    %v471 = vmul.f32 %v470, 1.442695
    %v472 = vpow.pop %v471
    %v473 = vadd.f32 %v472, 1.0
    %v474 = vrcp.pop %v473
    %v475 = vmul.f32 1.0, %v474
    %v476 = vtanh.pop %v469
    %s477 = scalar_lea.vmem %s6, 4
    %v478 = vld [vmem:[%s477] sm:$0xf]
    %480 = vrot.lane.b32.xlu0 %v478, 32
    %v481 = vpop.permute.xlu0 %480
    %v483 = vmul.f32 %v475, %v481
    %485 = vrot.lane.b32.xlu0 %v476, 64
    %v486 = vpop.permute.xlu0 %485
    %v488 = vmul.f32 %v475, %v486
    %490 = vrot.lane.b32.xlu0 %v488, 32
    %v491 = vpop.permute.xlu0 %490
    %v493 = vadd.f32 %v483, %v491
    %v494 = vtanh.pop %v493
    %496 = vrot.lane.b32.xlu0 %v494, 64
    %v497 = vpop.permute.xlu0 %496
    %v499 = vmul.f32 %v475, %v497
    %501 = vrot.lane.b32.xlu0 %v493, 96
    %v502 = vpop.permute.xlu0 %501
    %s504 = scalar_lea.vmem %s11, 4
    %505 = vst.msk [vmem:[%s504] sm:$0xf] %vm297, %v502
    %507 = vrot.lane.b32.xlu0 %v499, 32
    %v508 = vpop.permute.xlu0 %507
    %s510 = scalar_lea.vmem %s10, 4
    %511 = vst.msk [vmem:[%s510] sm:$0xf] %vm297, %v508
    %v512 = vld [vmem:[%s7] sm:$0xff]
    %v513 = vld [vmem:[%s7 + $0x8] sm:$0xff]
    %v514 = vld [vmem:[%s7 + $0x10] sm:$0xff]
    %v515 = vld [vmem:[%s7 + $0x18] sm:$0xff]
    %v516 = vld [vmem:[#allocation7] sm:$0x1]
    %v518 = vlaneseq
    %v519 = vshrl.u32 %v518, 7
    %v520 = vsub.s32 0, %v519
    %v521 = vrot.slane %v516, %v520
    %v523 = vsel %vm109, %v508, 0
    %525 = vmatprep.subr.mxu0 0.0
    %526 = vmatpush1.msra.mxu0 %v512
    %527 = vmatprep.subr.mxu0 0.0
    %528 = vmatpush1.msra.mxu0 %v513
    %529 = vmatprep.subr.mxu0 0.0
    %530 = vmatpush1.msra.mxu0 %v514
    %531 = vmatprep.subr.mxu0 0.0
    %532 = vmatpush1.msra.mxu0 %v515
    %533 = vmatprep.subr.mxu0 0.0
    %534 = vmatpush1.msra.mxu0 0.0
    %535 = vmatprep.subr.mxu0 0.0
    %536 = vmatpush1.msra.mxu0 0.0
    %537 = vmatprep.subr.mxu0 0.0
    %538 = vmatpush1.msra.mxu0 0.0
    %539 = vmatprep.subr.mxu0 0.0
    %540 = vmatpush1.msra.mxu0 0.0
    %541 = vmatprep.subr.mxu0 0.0
    %542 = vmatpush1.msra.mxu0 0.0
    %543 = vmatprep.subr.mxu0 0.0
    %544 = vmatpush1.msra.mxu0 0.0
    %545 = vmatprep.subr.mxu0 0.0
    %546 = vmatpush1.msra.mxu0 0.0
    %547 = vmatprep.subr.mxu0 0.0
    %548 = vmatpush1.msra.mxu0 0.0
    %549 = vmatprep.subr.mxu0 0.0
    %550 = vmatpush1.msra.mxu0 0.0
    %551 = vmatprep.subr.mxu0 0.0
    %552 = vmatpush1.msra.mxu0 0.0
    %553 = vmatprep.subr.mxu0 0.0
    %554 = vmatpush1.msra.mxu0 0.0
    %555 = vmatprep.subr.mxu0 0.0
    %556 = vmatpush1.msra.mxu0 0.0
    %557 = vmatprep.subr.mxu0 0.0
    %558 = vmatpush1.msra.mxu0 0.0
    %559 = vmatprep.subr.mxu0 0.0
    %560 = vmatpush1.msra.mxu0 0.0
    %561 = vmatprep.subr.mxu0 0.0
    %562 = vmatpush1.msra.mxu0 0.0
    %563 = vmatprep.subr.mxu0 0.0
    %564 = vmatpush1.msra.mxu0 0.0
    %565 = vmatprep.subr.mxu0 0.0
    %566 = vmatpush1.msra.mxu0 0.0
    %567 = vmatprep.subr.mxu0 0.0
    %568 = vmatpush1.msra.mxu0 0.0
    %569 = vmatprep.subr.mxu0 0.0
    %570 = vmatpush1.msra.mxu0 0.0
    %571 = vmatprep.subr.mxu0 0.0
    %572 = vmatpush1.msra.mxu0 0.0
    %573 = vmatprep.subr.mxu0 0.0
    %574 = vmatpush1.msra.mxu0 0.0
    %575 = vmatprep.subr.mxu0 0.0
    %576 = vmatpush1.msra.mxu0 0.0
    %577 = vmatprep.subr.mxu0 0.0
    %578 = vmatpush1.msra.mxu0 0.0
    %579 = vmatprep.subr.mxu0 0.0
    %580 = vmatpush1.msra.mxu0 0.0
    %581 = vmatprep.subr.mxu0 0.0
    %582 = vmatpush1.msra.mxu0 0.0
    %583 = vmatprep.subr.mxu0 0.0
    %584 = vmatpush1.msra.mxu0 0.0
    %585 = vmatprep.subr.mxu0 0.0
    %586 = vmatpush1.msra.mxu0 0.0
    %587 = vmatprep.subr.mxu0 0.0
    %588 = vmatpush1.msra.mxu0 0.0
    %589 = vmatprep.mubr.f32.mxu0 0.0
    %590 = vmatmul.mubr.f32.gmra.mrb[0].mxu0 %v523
    %v591 = vpop.f32.mrb[0].mxu0
    %v592 = vadd.f32 %v521, %v591
    %v593 = vpop.f32.mrb[0].mxu0
    %594 = vdwg.mxu0
    %595 = vst [vmem:[#allocation9] sm:$0xf] %v592
    // Predicated region
    $region50: #{decoder_lstm_forward.1} parent=1 // pred_check
      _
    $region51: #{decoder_lstm_forward.1} parent=1 // pred_check_branch
      %597 = sbr.rel (0) target = $region53
    $region52: #{decoder_lstm_forward.1} parent=1 // pred_region
      %s599 = ssub.s32 64, 64
      %600 = vsyncadd [#allocation4], %s599
      %s602 = sshll.u32 [#allocation9], 4
      %s603 = int_to_ptr.vmem [resolvable:$true] %s602
      %605 = dma.vmem_to_hbm [thread:$0]  %s603, 64, %s9, [#allocation4]
    $region53: #{decoder_lstm_forward.1} parent=1 // pred_fallthru
      _
    // Predicated region
    $region54: #{decoder_lstm_forward.1} parent=1 // pred_check
      _
    $region55: #{decoder_lstm_forward.1} parent=1 // pred_check_branch
      %607 = sbr.rel (0) target = $region57
    $region56: #{decoder_lstm_forward.1} parent=1 // pred_region
      _
    $region57: #{decoder_lstm_forward.1} parent=1 // pred_fallthru
      _
    // Predicated region
    $region58: #{decoder_lstm_forward.1} parent=1 // pred_check
      _
    $region59: #{decoder_lstm_forward.1} parent=1 // pred_check_branch
      %609 = sbr.rel (0) target = $region61
    $region60: #{decoder_lstm_forward.1} parent=1 // pred_region
      _
    $region61: #{decoder_lstm_forward.1} parent=1 // pred_fallthru
      _
    // Predicated region
    $region62: #{decoder_lstm_forward.1} parent=1 // pred_check
      _
    $region63: #{decoder_lstm_forward.1} parent=1 // pred_check_branch
      %611 = sbr.rel (0) target = $region65
    $region64: #{decoder_lstm_forward.1} parent=1 // pred_region
      %612 = dma.done [#allocation4], 64
    $region65: #{decoder_lstm_forward.1} parent=1 // pred_fallthru
      _
    // Predicated region
    $region66: #{decoder_lstm_forward.1} parent=1 // pred_check
      _
    $region67: #{decoder_lstm_forward.1} parent=1 // pred_check_branch
      %614 = sbr.rel (0) target = $region69
    $region68: #{decoder_lstm_forward.1} parent=1 // pred_region
      _
    $region69: #{decoder_lstm_forward.1} parent=1 // pred_fallthru
      _
    // Predicated region
    $region70: #{decoder_lstm_forward.1} parent=1 // pred_check
      _
    $region71: #{decoder_lstm_forward.1} parent=1 // pred_check_branch
      %616 = sbr.rel (0) target = $region73
    $region72: #{decoder_lstm_forward.1} parent=1 // pred_region
      _
    $region73: #{decoder_lstm_forward.1} parent=1 // pred_fallthru
      _
    %617 = vsyncpa [#allocation3], 1
    %618 = vsyncpa [#allocation8], 1
    %619 = vsyncpa [#allocation4], 1
    %620 = vsyncpa [#allocation5], 1

</llo_original>
